<compile_context>
chip_gen: v5e
topology: v5e:2x2
jax: 0.10.0
libtpu: 0.0.40
codegen_flags: <defaults>
</compile_context>

<pallas_src>
import jax
import jax.numpy as jnp
from jax.experimental import pallas as pl
from jax.experimental.pallas import tpu as pltpu

EMBED_DIM = 32
N_PITCH = 12        # root_pitch_embedding vocab
N_INTERVAL = 12     # interval_embedding in_features
N_INVERSION = 4     # inversion_embedding vocab

PACK_LANES = 32     # packed lanes per chord row: [dur, int(12), root_oh(12), inv_oh(4), pad(3)]
ROWS_PER_PACK = 4   # chord rows folded into one 128-lane packed row
PACKED_W = PACK_LANES * ROWS_PER_PACK   # 128


def _round_up(x, m):
    return ((x + m - 1) // m) * m


# --------------------------------------------------------------------------- #
# Kernel: one lane-dense matmul + bias per tile.
# --------------------------------------------------------------------------- #
def chord_embedding_kernel(feat_ref, w_ref, b_ref, out_ref):
    out_ref[...] = (jnp.dot(feat_ref[...], w_ref[...],
                            preferred_element_type=jnp.float32)
                    + b_ref[...]).astype(out_ref.dtype)


# --------------------------------------------------------------------------- #
# Parameter init (PyTorch-equivalent parameterization) and weight folding
# --------------------------------------------------------------------------- #
def init_params(key, embedding_dim=EMBED_DIM):
    ks = jax.random.split(key, 8)

    def linear_init(kw, kb, fan_in, fan_out):
        bound = 1.0 / jnp.sqrt(jnp.float32(fan_in))
        w = jax.random.uniform(kw, (fan_in, fan_out), jnp.float32, -bound, bound)
        b = jax.random.uniform(kb, (1, fan_out), jnp.float32, -bound, bound)
        return w, b

    w_dur, b_dur = linear_init(ks[0], ks[1], 1, embedding_dim)
    w_int, b_int = linear_init(ks[2], ks[3], N_INTERVAL, embedding_dim)
    w_fuse, b_fuse = linear_init(ks[4], ks[5], 4 * embedding_dim, embedding_dim)
    root_tbl = jax.random.normal(ks[6], (N_PITCH, embedding_dim), jnp.float32)
    inv_tbl = jax.random.normal(ks[7], (N_INVERSION, embedding_dim), jnp.float32)
    return dict(w_dur=w_dur, b_dur=b_dur, w_int=w_int, b_int=b_int,
                w_fuse=w_fuse, b_fuse=b_fuse, root_tbl=root_tbl, inv_tbl=inv_tbl)


def _fold_params(params):
    """Fold every sub-embedding through its fusion block, then 4x block-diag."""
    D = EMBED_DIM
    w_fuse = params['w_fuse']                    # (4D, D), rows ordered as the concat
    wf_dur = w_fuse[0 * D:1 * D]
    wf_root = w_fuse[1 * D:2 * D]
    wf_int = w_fuse[2 * D:3 * D]
    wf_inv = w_fuse[3 * D:4 * D]

    # Folded weight over the 32 packed lanes of one chord row.
    w_fold = jnp.zeros((PACK_LANES, D), jnp.float32)
    w_fold = w_fold.at[0:1].set(params['w_dur'] @ wf_dur)                    # dur lane
    w_fold = w_fold.at[1:1 + N_INTERVAL].set(params['w_int'] @ wf_int)       # interval lanes
    w_fold = w_fold.at[13:13 + N_PITCH].set(params['root_tbl'] @ wf_root)    # root one-hot lanes
    w_fold = w_fold.at[25:25 + N_INVERSION].set(params['inv_tbl'] @ wf_inv)  # inversion one-hot lanes
    # lanes 29..31 (pad) stay zero.

    b_fold = (params['b_dur'] @ wf_dur + params['b_int'] @ wf_int
              + params['b_fuse'])                                            # (1, D)

    # 4-way block-diagonal replication -> lane-dense (128, 128) weight / (1, 128) bias.
    w_bd = jnp.kron(jnp.eye(ROWS_PER_PACK, dtype=jnp.float32), w_fold)       # (128, 128)
    b_bd = jnp.tile(b_fold, (1, ROWS_PER_PACK))                              # (1, 128)
    return w_bd, b_bd


# --------------------------------------------------------------------------- #
# Forward wrapper
# --------------------------------------------------------------------------- #
def chord_embedding_forward(batchdata, params, tile_p=None):
    D = EMBED_DIM
    durations = batchdata['durations'].astype(jnp.float32)        # (B, S, 1)
    root = batchdata['root_pitchs'][..., 0]                       # (B, S) int
    intervals = batchdata['intervals'].astype(jnp.float32)        # (B, S, 12)
    inversions = batchdata['inversions'][..., 0]                  # (B, S) int

    B, S = root.shape
    N = B * S

    # Host-side lane-dense pack (one-hots included): (N, 32).
    feat32 = jnp.concatenate([
        durations.reshape(N, 1),
        intervals.reshape(N, N_INTERVAL),
        jax.nn.one_hot(root.reshape(N), N_PITCH, dtype=jnp.float32),
        jax.nn.one_hot(inversions.reshape(N), N_INVERSION, dtype=jnp.float32),
        jnp.zeros((N, PACK_LANES - (1 + N_INTERVAL + N_PITCH + N_INVERSION)),
                  jnp.float32),
    ], axis=-1)

    P = pl.cdiv(N, ROWS_PER_PACK)                 # packed 128-lane rows needed

    if tile_p is None:
        # Large tiles to amortize the ~0.35us/step grid overhead.  At the cap,
        # a step moves tile_p*128*4 B in + out ~= 2 MiB (double-buffered ~4 MiB),
        # far under scoped VMEM on any generation (incl. v7x's 64 MiB).
        TILE_CAP = 2048                           # == 8192 chord rows per step
        num_steps = max(1 if P <= 8 else 2, pl.cdiv(P, TILE_CAP))
        if num_steps > 1 and num_steps % 2:
            num_steps += 1                        # even split across v7x's 2 TCs
        tile_p = _round_up(pl.cdiv(P, num_steps), 8)

    num_steps = pl.cdiv(P, tile_p)
    if num_steps > 1 and num_steps % 2:
        num_steps += 1                            # keep grid step count even (v7x)
    p_pad = tile_p * num_steps
    n_row_pad = p_pad * ROWS_PER_PACK

    if n_row_pad > N:
        feat32 = jnp.pad(feat32, ((0, n_row_pad - N), (0, 0)))
    feat = feat32.reshape(p_pad, PACKED_W)        # (p_pad, 128), contiguous repack

    w_bd, b_bd = _fold_params(params)

    out = pl.pallas_call(
        chord_embedding_kernel,
        out_shape=jax.ShapeDtypeStruct((p_pad, PACKED_W), jnp.float32),
        grid=(num_steps,),
        in_specs=[
            pl.BlockSpec((tile_p, PACKED_W), lambda i: (i, 0)),      # packed rows
            pl.BlockSpec((PACKED_W, PACKED_W), lambda i: (0, 0)),    # block-diag weight
            pl.BlockSpec((1, PACKED_W), lambda i: (0, 0)),           # tiled bias
        ],
        out_specs=pl.BlockSpec((tile_p, PACKED_W), lambda i: (i, 0)),
        compiler_params=pltpu.CompilerParams(
            dimension_semantics=("parallel",)),
    )(feat, w_bd, b_bd)

    # Unpack 128 lanes -> 4 rows x 32 lanes, drop padding rows.
    return out.reshape(n_row_pad, D)[:N].reshape(B, S, D)


# --------------------------------------------------------------------------- #
# Pure-JAX reference (mirrors the PyTorch forward, unfolded)
# --------------------------------------------------------------------------- #
def chord_embedding_ref(batchdata, params):
    dur_emb = (batchdata['durations'].astype(jnp.float32) @ params['w_dur']
               + params['b_dur'][0])
    root_emb = params['root_tbl'][batchdata['root_pitchs'][..., 0]]
    int_emb = (batchdata['intervals'].astype(jnp.float32) @ params['w_int']
               + params['b_int'][0])
    inv_emb = params['inv_tbl'][batchdata['inversions'][..., 0]]
    combined = jnp.concatenate([dur_emb, root_emb, int_emb, inv_emb], axis=-1)
    return combined @ params['w_fuse'] + params['b_fuse'][0]


# --------------------------------------------------------------------------- #
if __name__ == "__main__":
    key = jax.random.PRNGKey(0)
    k_param, k_dur, k_root, k_int, k_inv = jax.random.split(key, 5)
    params = init_params(k_param, EMBED_DIM)

    def make_batch(kd, kr, ki, kv, B, S):
        return {
            'durations': jax.random.uniform(kd, (B, S, 1), jnp.float32, 0.25, 4.0),
            'root_pitchs': jax.random.randint(kr, (B, S, 1), 0, N_PITCH, jnp.int32),
            'intervals': jax.random.randint(ki, (B, S, N_INTERVAL), 0, 2, jnp.int32),
            'inversions': jax.random.randint(kv, (B, S, 1), 0, N_INVERSION, jnp.int32),
        }

    # Case 1: small (B*S=16) -> single grid step, padded to one 8x128 tile.
    batch1 = make_batch(k_dur, k_root, k_int, k_inv, 2, 8)
    out1 = jax.block_until_ready(chord_embedding_forward(batch1, params))
    ref1 = chord_embedding_ref(batch1, params)
    assert out1.shape == (2, 8, EMBED_DIM), out1.shape
    assert jnp.allclose(out1, ref1, atol=1e-4, rtol=1e-4), "case1 mismatch"

    # Case 2: row count not a multiple of 4 or 8 -> exercises padding path.
    k2 = jax.random.split(key, 4)
    batch2 = make_batch(k2[0], k2[1], k2[2], k2[3], 3, 7)
    out2 = jax.block_until_ready(chord_embedding_forward(batch2, params))
    ref2 = chord_embedding_ref(batch2, params)
    assert out2.shape == (3, 7, EMBED_DIM), out2.shape
    assert jnp.allclose(out2, ref2, atol=1e-4, rtol=1e-4), "case2 mismatch"

    # Case 3: exercises the multi-step (even) parallel grid path.
    k3 = jax.random.split(jax.random.PRNGKey(1), 4)
    batch3 = make_batch(k3[0], k3[1], k3[2], k3[3], 4, 96)
    out3 = jax.block_until_ready(chord_embedding_forward(batch3, params))
    ref3 = chord_embedding_ref(batch3, params)
    assert out3.shape == (4, 96, EMBED_DIM), out3.shape
    assert jnp.allclose(out3, ref3, atol=1e-4, rtol=1e-4), "case3 mismatch"

    print("KERNEL_OK")
</pallas_src>

<mosaic_0001>
module attributes {stable_mosaic.version = 11 : i64} {
  func.func @chord_embedding_kernel(%arg0: i32, %arg1: memref<8x128xf32, #tpu.memory_space<vmem>>, %arg2: memref<128x128xf32, #tpu.memory_space<vmem>>, %arg3: memref<1x128xf32, #tpu.memory_space<vmem>>, %arg4: memref<8x128xf32, #tpu.memory_space<vmem>>) attributes {dimension_semantics = [#tpu.dimension_semantics<parallel>], iteration_bounds = array<i64: 1>, scalar_prefetch = 0 : i64, scratch_operands = 0 : i64, tpu.core_type = #tpu.core_type<tc>, window_params = [{transform_indices = @transform_0, window_bounds = array<i64: 8, 128>}, {pipeline_mode = #tpu.pipeline_mode<synchronous>, transform_indices = @transform_1, window_bounds = array<i64: 128, 128>}, {pipeline_mode = #tpu.pipeline_mode<synchronous>, transform_indices = @transform_2, window_bounds = array<i64: 1, 128>}, {transform_indices = @transform_3, window_bounds = array<i64: 8, 128>}]} {
    %c0 = arith.constant 0 : index
    %c0_0 = arith.constant 0 : index
    %0 = vector.load %arg1[%c0, %c0_0] : memref<8x128xf32, #tpu.memory_space<vmem>>, vector<8x128xf32>
    %c0_1 = arith.constant 0 : index
    %c0_2 = arith.constant 0 : index
    %1 = vector.load %arg2[%c0_1, %c0_2] : memref<128x128xf32, #tpu.memory_space<vmem>>, vector<128x128xf32>
    %cst = arith.constant dense<0.000000e+00> : vector<8x128xf32>
    %2 = tpu.matmul %0, %1, %cst {dimension_numbers = #tpu.dot_dimension_numbers<[1], [0], [0], [1], [0, 0, 1, 1], [], []>} : vector<8x128xf32>, vector<128x128xf32>, vector<8x128xf32> -> vector<8x128xf32>
    %c0_3 = arith.constant 0 : index
    %c0_4 = arith.constant 0 : index
    %3 = vector.load %arg3[%c0_3, %c0_4] : memref<1x128xf32, #tpu.memory_space<vmem>>, vector<1x128xf32>
    %4 = vector.broadcast %3 : vector<1x128xf32> to vector<8x128xf32>
    %5 = arith.addf %2, %4 : vector<8x128xf32>
    %c0_5 = arith.constant 0 : index
    %c0_6 = arith.constant 0 : index
    %6 = vector.load %arg4[%c0_5, %c0_6] : memref<8x128xf32, #tpu.memory_space<vmem>>, vector<8x128xf32>
    tpu.vector_store %arg4[%c0_5, %c0_6], %5 {strides = array<i32>} : memref<8x128xf32, #tpu.memory_space<vmem>>, vector<8x128xf32>,
    return
  }
  func.func @transform_0(%arg0: i32) -> (i32, i32) {
    %c0_i32 = arith.constant 0 : i32
    %c0_i32_0 = arith.constant 0 : i32
    return %arg0, %c0_i32 : i32, i32
  }
  func.func @transform_1(%arg0: i32) -> (i32, i32) {
    %c0_i32 = arith.constant 0 : i32
    %c0_i32_0 = arith.constant 0 : i32
    %c0_i32_1 = arith.constant 0 : i32
    return %c0_i32, %c0_i32_0 : i32, i32
  }
  func.func @transform_2(%arg0: i32) -> (i32, i32) {
    %c0_i32 = arith.constant 0 : i32
    %c0_i32_0 = arith.constant 0 : i32
    %c0_i32_1 = arith.constant 0 : i32
    return %c0_i32, %c0_i32_0 : i32, i32
  }
  func.func @transform_3(%arg0: i32) -> (i32, i32) {
    %c0_i32 = arith.constant 0 : i32
    %c0_i32_0 = arith.constant 0 : i32
    return %arg0, %c0_i32 : i32, i32
  }
}

</mosaic_0001>

<llo_original>
// kernel: tpu_custom_call.1
$region0: #{tpu_custom_call.1}
  #allocation0 [shape = 'u32[]', space=smem, size = 0x4, offset = 0x4, fixed_abs, tag = 'smem constant byte address 0x4 - core index']
  #allocation1 [shape = 'u32[72,128]{1,0:T(1,128)}', space=vmem, size = 0x9000, scoped, tag = 'internal scratch']
  %s0 = inlined_call_operand.hbm [shape: f32[8,128], index: 0, kind: input, shape index: {}]
  %s1 = inlined_call_operand.hbm [shape: f32[128,128], index: 1, kind: input, shape index: {}]
  %s2 = inlined_call_operand.vmem [shape: f32[1,128], index: 2, kind: input, shape index: {}]
  %s3 = inlined_call_operand.hbm [shape: f32[8,128], index: 3, kind: output, shape index: {}]
  %s4 = sld [smem:[#allocation0]]
  $region30: #{tpu_custom_call.1} parent=0
    _
  %s6 = ssub.s32 1, %s4
  %s7 = scalar_select 0, %s6, %s4
  $region1: #{tpu_custom_call.1} parent=0
    #allocation2 [shape = 'u8[4096]{0}', space=vmem, size = 0x1000, scoped, tag = 'input window, operand 0, single buffered']
    #allocation3 [shape = 's32[1]{0}', space=sflag, size = 0x4, scoped, tag = 'scoped memory for tpu_custom_call.1']
    #allocation4 [shape = 's32[1]{0}', space=sflag, size = 0x4, scoped, tag = 'scoped memory for tpu_custom_call.1']
    #allocation5 [shape = 'u8[65536]{0}', space=vmem, size = 0x10000, scoped, tag = 'input window, operand 1, single buffered']
    #allocation6 [shape = 's32[1]{0}', space=sflag, size = 0x4, scoped, tag = 'scoped memory for tpu_custom_call.1']
    #allocation7 [shape = 'u8[4096]{0}', space=vmem, size = 0x1000, scoped, tag = 'output window, operand 0, single buffered']
    %8 = vsyncpa [#allocation3], 0
    %9 = vsyncpa [#allocation6], 0
    %10 = vsyncpa [#allocation4], 0
    // Predicated region
    $region2: #{tpu_custom_call.1} parent=1 // pred_check
      _
    $region3: #{tpu_custom_call.1} parent=1 // pred_check_branch
      %12 = sbr.rel (0) target = $region5
    $region4: #{tpu_custom_call.1} parent=1 // pred_region
      %14 = vsyncadd [#allocation3], 0
      %s16 = sshll.u32 %s0, 4
      %s17 = int_to_ptr.hbm [resolvable:$true] %s16
      %s18 = sshll.u32 [#allocation2], 4
      %s19 = int_to_ptr.vmem [resolvable:$true] %s18
      %21 = dma.hbm_to_vmem [thread:$0]  %s17, 128, %s19, [#allocation3]
    $region5: #{tpu_custom_call.1} parent=1 // pred_fallthru
      _
    // Predicated region
    $region6: #{tpu_custom_call.1} parent=1 // pred_check
      _
    $region7: #{tpu_custom_call.1} parent=1 // pred_check_branch
      %23 = sbr.rel (0) target = $region9
    $region8: #{tpu_custom_call.1} parent=1 // pred_region
      %25 = vsyncadd [#allocation6], 0
      %s26 = sshll.u32 %s1, 4
      %s27 = int_to_ptr.hbm [resolvable:$true] %s26
      %s28 = sshll.u32 [#allocation5], 4
      %s29 = int_to_ptr.vmem [resolvable:$true] %s28
      %34 = dma.hbm_to_vmem [thread:$0]  %s27, 2048, %s29, [#allocation6], 128, 128, 8
    $region9: #{tpu_custom_call.1} parent=1 // pred_fallthru
      _
    // Predicated region
    $region10: #{tpu_custom_call.1} parent=1 // pred_check
      _
    $region11: #{tpu_custom_call.1} parent=1 // pred_check_branch
      %36 = sbr.rel (0) target = $region13
    $region12: #{tpu_custom_call.1} parent=1 // pred_region
      _
    $region13: #{tpu_custom_call.1} parent=1 // pred_fallthru
      _
    // Predicated region
    $region14: #{tpu_custom_call.1} parent=1 // pred_check
      _
    $region15: #{tpu_custom_call.1} parent=1 // pred_check_branch
      %38 = sbr.rel (0) target = $region17
    $region16: #{tpu_custom_call.1} parent=1 // pred_region
      %40 = dma.done [#allocation3], 128
    $region17: #{tpu_custom_call.1} parent=1 // pred_fallthru
      _
    // Predicated region
    $region18: #{tpu_custom_call.1} parent=1 // pred_check
      _
    $region19: #{tpu_custom_call.1} parent=1 // pred_check_branch
      %42 = sbr.rel (0) target = $region21
    $region20: #{tpu_custom_call.1} parent=1 // pred_region
      %44 = dma.done [#allocation6], 2048
    $region21: #{tpu_custom_call.1} parent=1 // pred_fallthru
      _
    %v45 = vld [vmem:[#allocation2] sm:$0xff]
    %v46 = vld [vmem:[#allocation5] sm:$0xff]
    %v47 = vld [vmem:[#allocation5 + $0x8] sm:$0xff]
    %v48 = vld [vmem:[#allocation5 + $0x10] sm:$0xff]
    %v49 = vld [vmem:[#allocation5 + $0x18] sm:$0xff]
    %v50 = vld [vmem:[#allocation5 + $0x20] sm:$0xff]
    %v51 = vld [vmem:[#allocation5 + $0x28] sm:$0xff]
    %v52 = vld [vmem:[#allocation5 + $0x30] sm:$0xff]
    %v53 = vld [vmem:[#allocation5 + $0x38] sm:$0xff]
    %v54 = vld [vmem:[#allocation5 + $0x40] sm:$0xff]
    %v55 = vld [vmem:[#allocation5 + $0x48] sm:$0xff]
    %v56 = vld [vmem:[#allocation5 + $0x50] sm:$0xff]
    %v57 = vld [vmem:[#allocation5 + $0x58] sm:$0xff]
    %v58 = vld [vmem:[#allocation5 + $0x60] sm:$0xff]
    %v59 = vld [vmem:[#allocation5 + $0x68] sm:$0xff]
    %v60 = vld [vmem:[#allocation5 + $0x70] sm:$0xff]
    %v61 = vld [vmem:[#allocation5 + $0x78] sm:$0xff]
    %v62 = vld [vmem:[%s2] sm:$0x1]
    %v64 = vperm.slane %v62, 0
    %66 = vmatpush.msra.mxu0 %v61
    %67 = vmatpush.msra.mxu0 %v60
    %68 = vmatpush.msra.mxu0 %v59
    %69 = vmatpush.msra.mxu0 %v58
    %70 = vmatpush.msra.mxu0 %v57
    %71 = vmatpush.msra.mxu0 %v56
    %72 = vmatpush.msra.mxu0 %v55
    %73 = vmatpush.msra.mxu0 %v54
    %74 = vmatpush.msra.mxu0 %v53
    %75 = vmatpush.msra.mxu0 %v52
    %76 = vmatpush.msra.mxu0 %v51
    %77 = vmatpush.msra.mxu0 %v50
    %78 = vmatpush.msra.mxu0 %v49
    %79 = vmatpush.msra.mxu0 %v48
    %80 = vmatpush.msra.mxu0 %v47
    %81 = vmatpush.msra.mxu0 %v46
    %82 = vmatmul.f32.gmra.mxu0 %v45
    %v83 = vpop.f32.mrf.mxu0
    %v84 = vadd.f32 %v64, %v83
    %85 = vdwg.mxu0
    %86 = vst [vmem:[#allocation7] sm:$0xff] %v84
    // Predicated region
    $region22: #{tpu_custom_call.1} parent=1 // pred_check
      _
    $region23: #{tpu_custom_call.1} parent=1 // pred_check_branch
      %88 = sbr.rel (0) target = $region25
    $region24: #{tpu_custom_call.1} parent=1 // pred_region
      %90 = vsyncadd [#allocation4], 0
      %s92 = sshll.u32 [#allocation7], 4
      %s93 = int_to_ptr.vmem [resolvable:$true] %s92
      %s94 = sshll.u32 %s3, 4
      %s95 = int_to_ptr.hbm [resolvable:$true] %s94
      %97 = dma.vmem_to_hbm [thread:$0]  %s93, 128, %s95, [#allocation4]
    $region25: #{tpu_custom_call.1} parent=1 // pred_fallthru
      _
    // Predicated region
    $region26: #{tpu_custom_call.1} parent=1 // pred_check
      _
    $region27: #{tpu_custom_call.1} parent=1 // pred_check_branch
      %99 = sbr.rel (0) target = $region29
    $region28: #{tpu_custom_call.1} parent=1 // pred_region
      %101 = dma.done [#allocation4], 128
    $region29: #{tpu_custom_call.1} parent=1 // pred_fallthru
      _
    %102 = vsyncpa [#allocation3], 1
    %103 = vsyncpa [#allocation6], 1
    %104 = vsyncpa [#allocation4], 1

</llo_original>
